<compile_context>
chip_gen: v7x
topology: tpu7x:2x2x1
jax: 0.10.0
libtpu: 0.0.40
codegen_flags: <defaults>
</compile_context>

<pallas_src>
import jax
import jax.numpy as jnp
from jax import lax
from jax.experimental import pallas as pl
from jax.experimental.pallas import tpu as pltpu


def _regmap_kernel(w_ref, x_ref, xtop_ref, xbot_ref, o_ref, xp_ref):
    """One (batch, H-tile) grid step.

    w_ref    : SMEM (C*9,) f32       folded depthwise*pointwise taps, w[c*9 + ki*3 + kj]
    x_ref    : VMEM (1, C, TH, W)    image rows of this tile
    xtop_ref : VMEM (1, C, HB, W)    row block containing the row just above the tile
    xbot_ref : VMEM (1, C, HB, W)    row block containing the row just below the tile
    o_ref    : VMEM (1, TH, W)       sigmoid(separable conv) output tile
    xp_ref   : VMEM (C, TH+2, W+2)   f32 scratch: zero-padded tile (halo included)
    """
    C, THp2, Wp2 = xp_ref.shape
    TH, W = THp2 - 2, Wp2 - 2
    HB = xtop_ref.shape[2]

    i = pl.program_id(1)
    n_h = pl.num_programs(1)

    # Build the zero-padded (C, TH+2, W+2) tile in VMEM.  Only the left/right columns
    # and halo-row corners actually rely on the zero fill; it is tiny vs. the compute.
    xp_ref[...] = jnp.zeros_like(xp_ref)
    xp_ref[:, 1:TH + 1, 1:W + 1] = x_ref[0].astype(jnp.float32)

    # Halo rows: real neighbour rows inside the image, zeros at the image borders
    # (scalar 0/1 mask keeps the module's zero-padding semantics).
    top_valid = (i > 0).astype(jnp.float32)
    bot_valid = (i < n_h - 1).astype(jnp.float32)
    top = xtop_ref[0, :, HB - 1:HB, :].astype(jnp.float32) * top_valid   # (C, 1, W)
    bot = xbot_ref[0, :, 0:1, :].astype(jnp.float32) * bot_valid         # (C, 1, W)
    xp_ref[:, 0:1, 1:W + 1] = top
    xp_ref[:, TH + 1:TH + 2, 1:W + 1] = bot

    # Depthwise 3x3 with the pointwise weight pre-folded into the taps:
    # 9*C scalar-broadcast FMAs on dense (TH, W) windows read straight from the ref.
    acc = jnp.zeros((TH, W), jnp.float32)
    for c in range(C):
        base = c * 9
        for ki in range(3):
            for kj in range(3):
                tap = w_ref[base + ki * 3 + kj]
                acc = acc + xp_ref[c, ki:ki + TH, kj:kj + W] * tap

    o_ref[0, :, :] = jax.nn.sigmoid(acc).astype(o_ref.dtype)


def _pick_tile_h(H, W, C, vmem_budget_bytes=8 * 1024 * 1024):
    """Largest H-row tile (multiple of 8, dividing H) whose working set fits the budget.
    Prefer >= 2 tiles so both v7x TensorCores get work even at B == 1."""
    if H % 8 != 0:
        return H                              # fall back: one tile per image

    candidates = [th for th in range(8, H + 1, 8) if H % th == 0]

    def tile_bytes(th):
        # double-buffered input tile + halo blocks + padded scratch + double-buffered out
        return 4 * (2 * C * th * W + 4 * C * 8 * W + C * (th + 2) * (W + 2) + 2 * th * W)

    fitting = sorted(th for th in candidates if tile_bytes(th) <= vmem_budget_bytes)
    if not fitting:
        return candidates[0]
    th = fitting[-1]
    if th == H and len(fitting) > 1:          # expose >= 2 grid steps along H
        th = fitting[-2]
    return th


def regression_map(x, dw_w, pw_w, *, tile_h=None):
    """x: (B, C, H, W); dw_w: (C, 1, 3, 3); pw_w: (1, C, 1, 1) -> (B, 1, H, W)."""
    B, C, H, W = x.shape

    TH = tile_h if tile_h is not None else _pick_tile_h(H, W, C)
    assert H % TH == 0, (H, TH)
    n_h = H // TH
    if n_h > 1:
        assert TH % 8 == 0, TH                # halo row blocks are sublane aligned
    HB = 8 if TH % 8 == 0 else H              # halo block height (8-row aligned)
    thb = TH // HB                            # H-tile size in halo-block units

    # Fold the 1x1 pointwise weight into the depthwise taps:
    #   w[c, ki, kj] = dw[c, 0, ki, kj] * pw[0, c, 0, 0]
    w_folded = (dw_w.reshape(C, 9) * pw_w.reshape(C, 1)).reshape(C * 9)
    w_folded = w_folded.astype(jnp.float32)

    out = pl.pallas_call(
        _regmap_kernel,
        out_shape=jax.ShapeDtypeStruct((B, H, W), x.dtype),
        grid_spec=pltpu.PrefetchScalarGridSpec(
            num_scalar_prefetch=0,
            grid=(B, n_h),
            in_specs=[
                # folded taps -> SMEM, read as scalars inside the kernel
                pl.BlockSpec(memory_space=pltpu.MemorySpace.SMEM),
                # this tile's rows
                pl.BlockSpec((1, C, TH, W), lambda b, i: (b, 0, i, 0)),
                # 8-row block containing the row above the tile (clamped at the top)
                pl.BlockSpec((1, C, HB, W),
                             lambda b, i: (b, 0, jnp.maximum(i * thb - 1, 0), 0)),
                # 8-row block containing the row below the tile (clamped at the bottom)
                pl.BlockSpec((1, C, HB, W),
                             lambda b, i: (b, 0, jnp.minimum((i + 1) * thb, H // HB - 1), 0)),
            ],
            out_specs=pl.BlockSpec((1, TH, W), lambda b, i: (b, i, 0)),
            scratch_shapes=[pltpu.VMEM((C, TH + 2, W + 2), jnp.float32)],
        ),
        compiler_params=pltpu.CompilerParams(
            dimension_semantics=("parallel", "parallel")),
    )(w_folded, x, x, x)

    return out.reshape(B, 1, H, W)


def _reference(x, dw_w, pw_w):
    """Pure-JAX reference mirroring the PyTorch module (NCHW convs)."""
    dn = ("NCHW", "OIHW", "NCHW")
    C = x.shape[1]
    dw_out = lax.conv_general_dilated(
        x, dw_w, window_strides=(1, 1), padding=((1, 1), (1, 1)),
        dimension_numbers=dn, feature_group_count=C)
    pw_out = lax.conv_general_dilated(
        dw_out, pw_w, window_strides=(1, 1), padding="VALID",
        dimension_numbers=dn)
    return jax.nn.sigmoid(pw_out)


if __name__ == "__main__":
    B, C, H, W = 2, 4, 16, 16

    key = jax.random.PRNGKey(0)
    kx, kdw, kpw = jax.random.split(key, 3)

    x = jax.random.normal(kx, (B, C, H, W), dtype=jnp.float32)
    # Parameter shapes match nn.Conv2d in SeparableConv2d(c_in, 1, 3, pad=1, bias=False):
    #   depthwise conv1 weight : (c_in, 1, 3, 3)    (groups = c_in)
    #   pointwise      weight  : (1, c_in, 1, 1)
    dw_w = 0.1 * jax.random.normal(kdw, (C, 1, 3, 3), dtype=jnp.float32)
    pw_w = 0.1 * jax.random.normal(kpw, (1, C, 1, 1), dtype=jnp.float32)

    out = regression_map(x, dw_w, pw_w)
    out = jax.block_until_ready(out)

    ref = _reference(x, dw_w, pw_w)
    assert out.shape == (B, 1, H, W), out.shape
    assert jnp.allclose(out, ref, rtol=1e-5, atol=1e-5), "mismatch vs reference"

    print("KERNEL_OK")
</pallas_src>

<mosaic_0001>
module attributes {stable_mosaic.version = 11 : i64} {
  func.func @_regmap_kernel(%arg0: i32, %arg1: i32, %arg2: memref<36xf32, #tpu.memory_space<smem>>, %arg3: memref<1x4x8x16xf32, #tpu.memory_space<vmem>>, %arg4: memref<1x4x8x16xf32, #tpu.memory_space<vmem>>, %arg5: memref<1x4x8x16xf32, #tpu.memory_space<vmem>>, %arg6: memref<1x8x16xf32, #tpu.memory_space<vmem>>, %arg7: memref<4x10x18xf32, #tpu.memory_space<vmem>>) attributes {dimension_semantics = [#tpu.dimension_semantics<parallel>, #tpu.dimension_semantics<parallel>], iteration_bounds = array<i64: 2, 2>, scalar_prefetch = 0 : i64, scratch_operands = 1 : i64, tpu.core_type = #tpu.core_type<tc>, window_params = [{transform_indices = @transform_0, window_bounds = array<i64: 36>}, {transform_indices = @transform_1, window_bounds = array<i64: 1, 4, 8, 16>}, {transform_indices = @transform_2, window_bounds = array<i64: 1, 4, 8, 16>}, {transform_indices = @transform_3, window_bounds = array<i64: 1, 4, 8, 16>}, {transform_indices = @transform_4, window_bounds = array<i64: 1, 8, 16>}]} {
    %cst = arith.constant 0.000000e+00 : f32
    %0 = vector.broadcast %cst : f32 to vector<4x10x18xf32>
    %c0 = arith.constant 0 : index
    %c0_0 = arith.constant 0 : index
    %c0_1 = arith.constant 0 : index
    %1 = vector.load %arg7[%c0, %c0_0, %c0_1] : memref<4x10x18xf32, #tpu.memory_space<vmem>>, vector<4x10x18xf32>
    tpu.vector_store %arg7[%c0, %c0_0, %c0_1], %0 {strides = array<i32>} : memref<4x10x18xf32, #tpu.memory_space<vmem>>, vector<4x10x18xf32>,
    %c0_2 = arith.constant 0 : index
    %c0_3 = arith.constant 0 : index
    %c0_4 = arith.constant 0 : index
    %c0_5 = arith.constant 0 : index
    %2 = vector.load %arg3[%c0_2, %c0_3, %c0_4, %c0_5] : memref<1x4x8x16xf32, #tpu.memory_space<vmem>>, vector<1x4x8x16xf32>
    %3 = vector.shape_cast %2 : vector<1x4x8x16xf32> to vector<4x8x16xf32>
    %c0_6 = arith.constant 0 : index
    %c1 = arith.constant 1 : index
    %c1_7 = arith.constant 1 : index
    %4 = vector.load %arg7[%c0_6, %c1, %c1_7] : memref<4x10x18xf32, #tpu.memory_space<vmem>>, vector<4x8x16xf32>
    tpu.vector_store %arg7[%c0_6, %c1, %c1_7], %3 {strides = array<i32>} : memref<4x10x18xf32, #tpu.memory_space<vmem>>, vector<4x8x16xf32>,
    %c0_i32 = arith.constant 0 : i32
    %5 = arith.cmpi sgt, %arg1, %c0_i32 : i32
    %6 = arith.extui %5 : i1 to i32
    %7 = arith.sitofp %6 : i32 to f32
    %c1_i32 = arith.constant 1 : i32
    %8 = arith.cmpi slt, %arg1, %c1_i32 : i32
    %9 = arith.extui %8 : i1 to i32
    %10 = arith.sitofp %9 : i32 to f32
    %c0_8 = arith.constant 0 : index
    %c0_9 = arith.constant 0 : index
    %c7 = arith.constant 7 : index
    %c0_10 = arith.constant 0 : index
    %11 = vector.load %arg4[%c0_8, %c0_9, %c7, %c0_10] : memref<1x4x8x16xf32, #tpu.memory_space<vmem>>, vector<1x4x1x16xf32>
    %12 = vector.shape_cast %11 : vector<1x4x1x16xf32> to vector<4x1x16xf32>
    %13 = vector.broadcast %7 : f32 to vector<4x1x16xf32>
    %14 = arith.mulf %12, %13 : vector<4x1x16xf32>
    %c0_11 = arith.constant 0 : index
    %c0_12 = arith.constant 0 : index
    %c0_13 = arith.constant 0 : index
    %c0_14 = arith.constant 0 : index
    %15 = vector.load %arg5[%c0_11, %c0_12, %c0_13, %c0_14] : memref<1x4x8x16xf32, #tpu.memory_space<vmem>>, vector<1x4x1x16xf32>
    %16 = vector.shape_cast %15 : vector<1x4x1x16xf32> to vector<4x1x16xf32>
    %17 = vector.broadcast %10 : f32 to vector<4x1x16xf32>
    %18 = arith.mulf %16, %17 : vector<4x1x16xf32>
    %c0_15 = arith.constant 0 : index
    %c0_16 = arith.constant 0 : index
    %c1_17 = arith.constant 1 : index
    %19 = vector.load %arg7[%c0_15, %c0_16, %c1_17] : memref<4x10x18xf32, #tpu.memory_space<vmem>>, vector<4x1x16xf32>
    tpu.vector_store %arg7[%c0_15, %c0_16, %c1_17], %14 {strides = array<i32>} : memref<4x10x18xf32, #tpu.memory_space<vmem>>, vector<4x1x16xf32>,
    %c0_18 = arith.constant 0 : index
    %c9 = arith.constant 9 : index
    %c1_19 = arith.constant 1 : index
    %20 = vector.load %arg7[%c0_18, %c9, %c1_19] : memref<4x10x18xf32, #tpu.memory_space<vmem>>, vector<4x1x16xf32>
    tpu.vector_store %arg7[%c0_18, %c9, %c1_19], %18 {strides = array<i32>} : memref<4x10x18xf32, #tpu.memory_space<vmem>>, vector<4x1x16xf32>,
    %cst_20 = arith.constant 0.000000e+00 : f32
    %21 = vector.broadcast %cst_20 : f32 to vector<8x16xf32>
    %c0_21 = arith.constant 0 : index
    %22 = memref.load %arg2[%c0_21] : memref<36xf32, #tpu.memory_space<smem>>
    %c0_22 = arith.constant 0 : index
    %c0_23 = arith.constant 0 : index
    %c0_24 = arith.constant 0 : index
    %23 = vector.load %arg7[%c0_22, %c0_23, %c0_24] : memref<4x10x18xf32, #tpu.memory_space<vmem>>, vector<1x8x16xf32>
    %24 = vector.shape_cast %23 : vector<1x8x16xf32> to vector<8x16xf32>
    %25 = vector.broadcast %22 : f32 to vector<8x16xf32>
    %26 = arith.mulf %24, %25 : vector<8x16xf32>
    %27 = arith.addf %21, %26 : vector<8x16xf32>
    %c1_25 = arith.constant 1 : index
    %28 = memref.load %arg2[%c1_25] : memref<36xf32, #tpu.memory_space<smem>>
    %c0_26 = arith.constant 0 : index
    %c0_27 = arith.constant 0 : index
    %c1_28 = arith.constant 1 : index
    %29 = vector.load %arg7[%c0_26, %c0_27, %c1_28] : memref<4x10x18xf32, #tpu.memory_space<vmem>>, vector<1x8x16xf32>
    %30 = vector.shape_cast %29 : vector<1x8x16xf32> to vector<8x16xf32>
    %31 = vector.broadcast %28 : f32 to vector<8x16xf32>
    %32 = arith.mulf %30, %31 : vector<8x16xf32>
    %33 = arith.addf %27, %32 : vector<8x16xf32>
    %c2 = arith.constant 2 : index
    %34 = memref.load %arg2[%c2] : memref<36xf32, #tpu.memory_space<smem>>
    %c0_29 = arith.constant 0 : index
    %c0_30 = arith.constant 0 : index
    %c2_31 = arith.constant 2 : index
    %35 = vector.load %arg7[%c0_29, %c0_30, %c2_31] : memref<4x10x18xf32, #tpu.memory_space<vmem>>, vector<1x8x16xf32>
    %36 = vector.shape_cast %35 : vector<1x8x16xf32> to vector<8x16xf32>
    %37 = vector.broadcast %34 : f32 to vector<8x16xf32>
    %38 = arith.mulf %36, %37 : vector<8x16xf32>
    %39 = arith.addf %33, %38 : vector<8x16xf32>
    %c3 = arith.constant 3 : index
    %40 = memref.load %arg2[%c3] : memref<36xf32, #tpu.memory_space<smem>>
    %c0_32 = arith.constant 0 : index
    %c1_33 = arith.constant 1 : index
    %c0_34 = arith.constant 0 : index
    %41 = vector.load %arg7[%c0_32, %c1_33, %c0_34] : memref<4x10x18xf32, #tpu.memory_space<vmem>>, vector<1x8x16xf32>
    %42 = vector.shape_cast %41 : vector<1x8x16xf32> to vector<8x16xf32>
    %43 = vector.broadcast %40 : f32 to vector<8x16xf32>
    %44 = arith.mulf %42, %43 : vector<8x16xf32>
    %45 = arith.addf %39, %44 : vector<8x16xf32>
    %c4 = arith.constant 4 : index
    %46 = memref.load %arg2[%c4] : memref<36xf32, #tpu.memory_space<smem>>
    %c0_35 = arith.constant 0 : index
    %c1_36 = arith.constant 1 : index
    %c1_37 = arith.constant 1 : index
    %47 = vector.load %arg7[%c0_35, %c1_36, %c1_37] : memref<4x10x18xf32, #tpu.memory_space<vmem>>, vector<1x8x16xf32>
    %48 = vector.shape_cast %47 : vector<1x8x16xf32> to vector<8x16xf32>
    %49 = vector.broadcast %46 : f32 to vector<8x16xf32>
    %50 = arith.mulf %48, %49 : vector<8x16xf32>
    %51 = arith.addf %45, %50 : vector<8x16xf32>
    %c5 = arith.constant 5 : index
    %52 = memref.load %arg2[%c5] : memref<36xf32, #tpu.memory_space<smem>>
    %c0_38 = arith.constant 0 : index
    %c1_39 = arith.constant 1 : index
    %c2_40 = arith.constant 2 : index
    %53 = vector.load %arg7[%c0_38, %c1_39, %c2_40] : memref<4x10x18xf32, #tpu.memory_space<vmem>>, vector<1x8x16xf32>
    %54 = vector.shape_cast %53 : vector<1x8x16xf32> to vector<8x16xf32>
    %55 = vector.broadcast %52 : f32 to vector<8x16xf32>
    %56 = arith.mulf %54, %55 : vector<8x16xf32>
    %57 = arith.addf %51, %56 : vector<8x16xf32>
    %c6 = arith.constant 6 : index
    %58 = memref.load %arg2[%c6] : memref<36xf32, #tpu.memory_space<smem>>
    %c0_41 = arith.constant 0 : index
    %c2_42 = arith.constant 2 : index
    %c0_43 = arith.constant 0 : index
    %59 = vector.load %arg7[%c0_41, %c2_42, %c0_43] : memref<4x10x18xf32, #tpu.memory_space<vmem>>, vector<1x8x16xf32>
    %60 = vector.shape_cast %59 : vector<1x8x16xf32> to vector<8x16xf32>
    %61 = vector.broadcast %58 : f32 to vector<8x16xf32>
    %62 = arith.mulf %60, %61 : vector<8x16xf32>
    %63 = arith.addf %57, %62 : vector<8x16xf32>
    %c7_44 = arith.constant 7 : index
    %64 = memref.load %arg2[%c7_44] : memref<36xf32, #tpu.memory_space<smem>>
    %c0_45 = arith.constant 0 : index
    %c2_46 = arith.constant 2 : index
    %c1_47 = arith.constant 1 : index
    %65 = vector.load %arg7[%c0_45, %c2_46, %c1_47] : memref<4x10x18xf32, #tpu.memory_space<vmem>>, vector<1x8x16xf32>
    %66 = vector.shape_cast %65 : vector<1x8x16xf32> to vector<8x16xf32>
    %67 = vector.broadcast %64 : f32 to vector<8x16xf32>
    %68 = arith.mulf %66, %67 : vector<8x16xf32>
    %69 = arith.addf %63, %68 : vector<8x16xf32>
    %c8 = arith.constant 8 : index
    %70 = memref.load %arg2[%c8] : memref<36xf32, #tpu.memory_space<smem>>
    %c0_48 = arith.constant 0 : index
    %c2_49 = arith.constant 2 : index
    %c2_50 = arith.constant 2 : index
    %71 = vector.load %arg7[%c0_48, %c2_49, %c2_50] : memref<4x10x18xf32, #tpu.memory_space<vmem>>, vector<1x8x16xf32>
    %72 = vector.shape_cast %71 : vector<1x8x16xf32> to vector<8x16xf32>
    %73 = vector.broadcast %70 : f32 to vector<8x16xf32>
    %74 = arith.mulf %72, %73 : vector<8x16xf32>
    %75 = arith.addf %69, %74 : vector<8x16xf32>
    %c9_51 = arith.constant 9 : index
    %76 = memref.load %arg2[%c9_51] : memref<36xf32, #tpu.memory_space<smem>>
    %c1_52 = arith.constant 1 : index
    %c0_53 = arith.constant 0 : index
    %c0_54 = arith.constant 0 : index
    %77 = vector.load %arg7[%c1_52, %c0_53, %c0_54] : memref<4x10x18xf32, #tpu.memory_space<vmem>>, vector<1x8x16xf32>
    %78 = vector.shape_cast %77 : vector<1x8x16xf32> to vector<8x16xf32>
    %79 = vector.broadcast %76 : f32 to vector<8x16xf32>
    %80 = arith.mulf %78, %79 : vector<8x16xf32>
    %81 = arith.addf %75, %80 : vector<8x16xf32>
    %c10 = arith.constant 10 : index
    %82 = memref.load %arg2[%c10] : memref<36xf32, #tpu.memory_space<smem>>
    %c1_55 = arith.constant 1 : index
    %c0_56 = arith.constant 0 : index
    %c1_57 = arith.constant 1 : index
    %83 = vector.load %arg7[%c1_55, %c0_56, %c1_57] : memref<4x10x18xf32, #tpu.memory_space<vmem>>, vector<1x8x16xf32>
    %84 = vector.shape_cast %83 : vector<1x8x16xf32> to vector<8x16xf32>
    %85 = vector.broadcast %82 : f32 to vector<8x16xf32>
    %86 = arith.mulf %84, %85 : vector<8x16xf32>
    %87 = arith.addf %81, %86 : vector<8x16xf32>
    %c11 = arith.constant 11 : index
    %88 = memref.load %arg2[%c11] : memref<36xf32, #tpu.memory_space<smem>>
    %c1_58 = arith.constant 1 : index
    %c0_59 = arith.constant 0 : index
    %c2_60 = arith.constant 2 : index
    %89 = vector.load %arg7[%c1_58, %c0_59, %c2_60] : memref<4x10x18xf32, #tpu.memory_space<vmem>>, vector<1x8x16xf32>
    %90 = vector.shape_cast %89 : vector<1x8x16xf32> to vector<8x16xf32>
    %91 = vector.broadcast %88 : f32 to vector<8x16xf32>
    %92 = arith.mulf %90, %91 : vector<8x16xf32>
    %93 = arith.addf %87, %92 : vector<8x16xf32>
    %c12 = arith.constant 12 : index
    %94 = memref.load %arg2[%c12] : memref<36xf32, #tpu.memory_space<smem>>
    %c1_61 = arith.constant 1 : index
    %c1_62 = arith.constant 1 : index
    %c0_63 = arith.constant 0 : index
    %95 = vector.load %arg7[%c1_61, %c1_62, %c0_63] : memref<4x10x18xf32, #tpu.memory_space<vmem>>, vector<1x8x16xf32>
    %96 = vector.shape_cast %95 : vector<1x8x16xf32> to vector<8x16xf32>
    %97 = vector.broadcast %94 : f32 to vector<8x16xf32>
    %98 = arith.mulf %96, %97 : vector<8x16xf32>
    %99 = arith.addf %93, %98 : vector<8x16xf32>
    %c13 = arith.constant 13 : index
    %100 = memref.load %arg2[%c13] : memref<36xf32, #tpu.memory_space<smem>>
    %c1_64 = arith.constant 1 : index
    %c1_65 = arith.constant 1 : index
    %c1_66 = arith.constant 1 : index
    %101 = vector.load %arg7[%c1_64, %c1_65, %c1_66] : memref<4x10x18xf32, #tpu.memory_space<vmem>>, vector<1x8x16xf32>
    %102 = vector.shape_cast %101 : vector<1x8x16xf32> to vector<8x16xf32>
    %103 = vector.broadcast %100 : f32 to vector<8x16xf32>
    %104 = arith.mulf %102, %103 : vector<8x16xf32>
    %105 = arith.addf %99, %104 : vector<8x16xf32>
    %c14 = arith.constant 14 : index
    %106 = memref.load %arg2[%c14] : memref<36xf32, #tpu.memory_space<smem>>
    %c1_67 = arith.constant 1 : index
    %c1_68 = arith.constant 1 : index
    %c2_69 = arith.constant 2 : index
    %107 = vector.load %arg7[%c1_67, %c1_68, %c2_69] : memref<4x10x18xf32, #tpu.memory_space<vmem>>, vector<1x8x16xf32>
    %108 = vector.shape_cast %107 : vector<1x8x16xf32> to vector<8x16xf32>
    %109 = vector.broadcast %106 : f32 to vector<8x16xf32>
    %110 = arith.mulf %108, %109 : vector<8x16xf32>
    %111 = arith.addf %105, %110 : vector<8x16xf32>
    %c15 = arith.constant 15 : index
    %112 = memref.load %arg2[%c15] : memref<36xf32, #tpu.memory_space<smem>>
    %c1_70 = arith.constant 1 : index
    %c2_71 = arith.constant 2 : index
    %c0_72 = arith.constant 0 : index
    %113 = vector.load %arg7[%c1_70, %c2_71, %c0_72] : memref<4x10x18xf32, #tpu.memory_space<vmem>>, vector<1x8x16xf32>
    %114 = vector.shape_cast %113 : vector<1x8x16xf32> to vector<8x16xf32>
    %115 = vector.broadcast %112 : f32 to vector<8x16xf32>
    %116 = arith.mulf %114, %115 : vector<8x16xf32>
    %117 = arith.addf %111, %116 : vector<8x16xf32>
    %c16 = arith.constant 16 : index
    %118 = memref.load %arg2[%c16] : memref<36xf32, #tpu.memory_space<smem>>
    %c1_73 = arith.constant 1 : index
    %c2_74 = arith.constant 2 : index
    %c1_75 = arith.constant 1 : index
    %119 = vector.load %arg7[%c1_73, %c2_74, %c1_75] : memref<4x10x18xf32, #tpu.memory_space<vmem>>, vector<1x8x16xf32>
    %120 = vector.shape_cast %119 : vector<1x8x16xf32> to vector<8x16xf32>
    %121 = vector.broadcast %118 : f32 to vector<8x16xf32>
    %122 = arith.mulf %120, %121 : vector<8x16xf32>
    %123 = arith.addf %117, %122 : vector<8x16xf32>
    %c17 = arith.constant 17 : index
    %124 = memref.load %arg2[%c17] : memref<36xf32, #tpu.memory_space<smem>>
    %c1_76 = arith.constant 1 : index
    %c2_77 = arith.constant 2 : index
    %c2_78 = arith.constant 2 : index
    %125 = vector.load %arg7[%c1_76, %c2_77, %c2_78] : memref<4x10x18xf32, #tpu.memory_space<vmem>>, vector<1x8x16xf32>
    %126 = vector.shape_cast %125 : vector<1x8x16xf32> to vector<8x16xf32>
    %127 = vector.broadcast %124 : f32 to vector<8x16xf32>
    %128 = arith.mulf %126, %127 : vector<8x16xf32>
    %129 = arith.addf %123, %128 : vector<8x16xf32>
    %c18 = arith.constant 18 : index
    %130 = memref.load %arg2[%c18] : memref<36xf32, #tpu.memory_space<smem>>
    %c2_79 = arith.constant 2 : index
    %c0_80 = arith.constant 0 : index
    %c0_81 = arith.constant 0 : index
    %131 = vector.load %arg7[%c2_79, %c0_80, %c0_81] : memref<4x10x18xf32, #tpu.memory_space<vmem>>, vector<1x8x16xf32>
    %132 = vector.shape_cast %131 : vector<1x8x16xf32> to vector<8x16xf32>
    %133 = vector.broadcast %130 : f32 to vector<8x16xf32>
    %134 = arith.mulf %132, %133 : vector<8x16xf32>
    %135 = arith.addf %129, %134 : vector<8x16xf32>
    %c19 = arith.constant 19 : index
    %136 = memref.load %arg2[%c19] : memref<36xf32, #tpu.memory_space<smem>>
    %c2_82 = arith.constant 2 : index
    %c0_83 = arith.constant 0 : index
    %c1_84 = arith.constant 1 : index
    %137 = vector.load %arg7[%c2_82, %c0_83, %c1_84] : memref<4x10x18xf32, #tpu.memory_space<vmem>>, vector<1x8x16xf32>
    %138 = vector.shape_cast %137 : vector<1x8x16xf32> to vector<8x16xf32>
    %139 = vector.broadcast %136 : f32 to vector<8x16xf32>
    %140 = arith.mulf %138, %139 : vector<8x16xf32>
    %141 = arith.addf %135, %140 : vector<8x16xf32>
    %c20 = arith.constant 20 : index
    %142 = memref.load %arg2[%c20] : memref<36xf32, #tpu.memory_space<smem>>
    %c2_85 = arith.constant 2 : index
    %c0_86 = arith.constant 0 : index
    %c2_87 = arith.constant 2 : index
    %143 = vector.load %arg7[%c2_85, %c0_86, %c2_87] : memref<4x10x18xf32, #tpu.memory_space<vmem>>, vector<1x8x16xf32>
    %144 = vector.shape_cast %143 : vector<1x8x16xf32> to vector<8x16xf32>
    %145 = vector.broadcast %142 : f32 to vector<8x16xf32>
    %146 = arith.mulf %144, %145 : vector<8x16xf32>
    %147 = arith.addf %141, %146 : vector<8x16xf32>
    %c21 = arith.constant 21 : index
    %148 = memref.load %arg2[%c21] : memref<36xf32, #tpu.memory_space<smem>>
    %c2_88 = arith.constant 2 : index
    %c1_89 = arith.constant 1 : index
    %c0_90 = arith.constant 0 : index
    %149 = vector.load %arg7[%c2_88, %c1_89, %c0_90] : memref<4x10x18xf32, #tpu.memory_space<vmem>>, vector<1x8x16xf32>
    %150 = vector.shape_cast %149 : vector<1x8x16xf32> to vector<8x16xf32>
    %151 = vector.broadcast %148 : f32 to vector<8x16xf32>
    %152 = arith.mulf %150, %151 : vector<8x16xf32>
    %153 = arith.addf %147, %152 : vector<8x16xf32>
    %c22 = arith.constant 22 : index
    %154 = memref.load %arg2[%c22] : memref<36xf32, #tpu.memory_space<smem>>
    %c2_91 = arith.constant 2 : index
    %c1_92 = arith.constant 1 : index
    %c1_93 = arith.constant 1 : index
    %155 = vector.load %arg7[%c2_91, %c1_92, %c1_93] : memref<4x10x18xf32, #tpu.memory_space<vmem>>, vector<1x8x16xf32>
    %156 = vector.shape_cast %155 : vector<1x8x16xf32> to vector<8x16xf32>
    %157 = vector.broadcast %154 : f32 to vector<8x16xf32>
    %158 = arith.mulf %156, %157 : vector<8x16xf32>
    %159 = arith.addf %153, %158 : vector<8x16xf32>
    %c23 = arith.constant 23 : index
    %160 = memref.load %arg2[%c23] : memref<36xf32, #tpu.memory_space<smem>>
    %c2_94 = arith.constant 2 : index
    %c1_95 = arith.constant 1 : index
    %c2_96 = arith.constant 2 : index
    %161 = vector.load %arg7[%c2_94, %c1_95, %c2_96] : memref<4x10x18xf32, #tpu.memory_space<vmem>>, vector<1x8x16xf32>
    %162 = vector.shape_cast %161 : vector<1x8x16xf32> to vector<8x16xf32>
    %163 = vector.broadcast %160 : f32 to vector<8x16xf32>
    %164 = arith.mulf %162, %163 : vector<8x16xf32>
    %165 = arith.addf %159, %164 : vector<8x16xf32>
    %c24 = arith.constant 24 : index
    %166 = memref.load %arg2[%c24] : memref<36xf32, #tpu.memory_space<smem>>
    %c2_97 = arith.constant 2 : index
    %c2_98 = arith.constant 2 : index
    %c0_99 = arith.constant 0 : index
    %167 = vector.load %arg7[%c2_97, %c2_98, %c0_99] : memref<4x10x18xf32, #tpu.memory_space<vmem>>, vector<1x8x16xf32>
    %168 = vector.shape_cast %167 : vector<1x8x16xf32> to vector<8x16xf32>
    %169 = vector.broadcast %166 : f32 to vector<8x16xf32>
    %170 = arith.mulf %168, %169 : vector<8x16xf32>
    %171 = arith.addf %165, %170 : vector<8x16xf32>
    %c25 = arith.constant 25 : index
    %172 = memref.load %arg2[%c25] : memref<36xf32, #tpu.memory_space<smem>>
    %c2_100 = arith.constant 2 : index
    %c2_101 = arith.constant 2 : index
    %c1_102 = arith.constant 1 : index
    %173 = vector.load %arg7[%c2_100, %c2_101, %c1_102] : memref<4x10x18xf32, #tpu.memory_space<vmem>>, vector<1x8x16xf32>
    %174 = vector.shape_cast %173 : vector<1x8x16xf32> to vector<8x16xf32>
    %175 = vector.broadcast %172 : f32 to vector<8x16xf32>
    %176 = arith.mulf %174, %175 : vector<8x16xf32>
    %177 = arith.addf %171, %176 : vector<8x16xf32>
    %c26 = arith.constant 26 : index
    %178 = memref.load %arg2[%c26] : memref<36xf32, #tpu.memory_space<smem>>
    %c2_103 = arith.constant 2 : index
    %c2_104 = arith.constant 2 : index
    %c2_105 = arith.constant 2 : index
    %179 = vector.load %arg7[%c2_103, %c2_104, %c2_105] : memref<4x10x18xf32, #tpu.memory_space<vmem>>, vector<1x8x16xf32>
    %180 = vector.shape_cast %179 : vector<1x8x16xf32> to vector<8x16xf32>
    %181 = vector.broadcast %178 : f32 to vector<8x16xf32>
    %182 = arith.mulf %180, %181 : vector<8x16xf32>
    %183 = arith.addf %177, %182 : vector<8x16xf32>
    %c27 = arith.constant 27 : index
    %184 = memref.load %arg2[%c27] : memref<36xf32, #tpu.memory_space<smem>>
    %c3_106 = arith.constant 3 : index
    %c0_107 = arith.constant 0 : index
    %c0_108 = arith.constant 0 : index
    %185 = vector.load %arg7[%c3_106, %c0_107, %c0_108] : memref<4x10x18xf32, #tpu.memory_space<vmem>>, vector<1x8x16xf32>
    %186 = vector.shape_cast %185 : vector<1x8x16xf32> to vector<8x16xf32>
    %187 = vector.broadcast %184 : f32 to vector<8x16xf32>
    %188 = arith.mulf %186, %187 : vector<8x16xf32>
    %189 = arith.addf %183, %188 : vector<8x16xf32>
    %c28 = arith.constant 28 : index
    %190 = memref.load %arg2[%c28] : memref<36xf32, #tpu.memory_space<smem>>
    %c3_109 = arith.constant 3 : index
    %c0_110 = arith.constant 0 : index
    %c1_111 = arith.constant 1 : index
    %191 = vector.load %arg7[%c3_109, %c0_110, %c1_111] : memref<4x10x18xf32, #tpu.memory_space<vmem>>, vector<1x8x16xf32>
    %192 = vector.shape_cast %191 : vector<1x8x16xf32> to vector<8x16xf32>
    %193 = vector.broadcast %190 : f32 to vector<8x16xf32>
    %194 = arith.mulf %192, %193 : vector<8x16xf32>
    %195 = arith.addf %189, %194 : vector<8x16xf32>
    %c29 = arith.constant 29 : index
    %196 = memref.load %arg2[%c29] : memref<36xf32, #tpu.memory_space<smem>>
    %c3_112 = arith.constant 3 : index
    %c0_113 = arith.constant 0 : index
    %c2_114 = arith.constant 2 : index
    %197 = vector.load %arg7[%c3_112, %c0_113, %c2_114] : memref<4x10x18xf32, #tpu.memory_space<vmem>>, vector<1x8x16xf32>
    %198 = vector.shape_cast %197 : vector<1x8x16xf32> to vector<8x16xf32>
    %199 = vector.broadcast %196 : f32 to vector<8x16xf32>
    %200 = arith.mulf %198, %199 : vector<8x16xf32>
    %201 = arith.addf %195, %200 : vector<8x16xf32>
    %c30 = arith.constant 30 : index
    %202 = memref.load %arg2[%c30] : memref<36xf32, #tpu.memory_space<smem>>
    %c3_115 = arith.constant 3 : index
    %c1_116 = arith.constant 1 : index
    %c0_117 = arith.constant 0 : index
    %203 = vector.load %arg7[%c3_115, %c1_116, %c0_117] : memref<4x10x18xf32, #tpu.memory_space<vmem>>, vector<1x8x16xf32>
    %204 = vector.shape_cast %203 : vector<1x8x16xf32> to vector<8x16xf32>
    %205 = vector.broadcast %202 : f32 to vector<8x16xf32>
    %206 = arith.mulf %204, %205 : vector<8x16xf32>
    %207 = arith.addf %201, %206 : vector<8x16xf32>
    %c31 = arith.constant 31 : index
    %208 = memref.load %arg2[%c31] : memref<36xf32, #tpu.memory_space<smem>>
    %c3_118 = arith.constant 3 : index
    %c1_119 = arith.constant 1 : index
    %c1_120 = arith.constant 1 : index
    %209 = vector.load %arg7[%c3_118, %c1_119, %c1_120] : memref<4x10x18xf32, #tpu.memory_space<vmem>>, vector<1x8x16xf32>
    %210 = vector.shape_cast %209 : vector<1x8x16xf32> to vector<8x16xf32>
    %211 = vector.broadcast %208 : f32 to vector<8x16xf32>
    %212 = arith.mulf %210, %211 : vector<8x16xf32>
    %213 = arith.addf %207, %212 : vector<8x16xf32>
    %c32 = arith.constant 32 : index
    %214 = memref.load %arg2[%c32] : memref<36xf32, #tpu.memory_space<smem>>
    %c3_121 = arith.constant 3 : index
    %c1_122 = arith.constant 1 : index
    %c2_123 = arith.constant 2 : index
    %215 = vector.load %arg7[%c3_121, %c1_122, %c2_123] : memref<4x10x18xf32, #tpu.memory_space<vmem>>, vector<1x8x16xf32>
    %216 = vector.shape_cast %215 : vector<1x8x16xf32> to vector<8x16xf32>
    %217 = vector.broadcast %214 : f32 to vector<8x16xf32>
    %218 = arith.mulf %216, %217 : vector<8x16xf32>
    %219 = arith.addf %213, %218 : vector<8x16xf32>
    %c33 = arith.constant 33 : index
    %220 = memref.load %arg2[%c33] : memref<36xf32, #tpu.memory_space<smem>>
    %c3_124 = arith.constant 3 : index
    %c2_125 = arith.constant 2 : index
    %c0_126 = arith.constant 0 : index
    %221 = vector.load %arg7[%c3_124, %c2_125, %c0_126] : memref<4x10x18xf32, #tpu.memory_space<vmem>>, vector<1x8x16xf32>
    %222 = vector.shape_cast %221 : vector<1x8x16xf32> to vector<8x16xf32>
    %223 = vector.broadcast %220 : f32 to vector<8x16xf32>
    %224 = arith.mulf %222, %223 : vector<8x16xf32>
    %225 = arith.addf %219, %224 : vector<8x16xf32>
    %c34 = arith.constant 34 : index
    %226 = memref.load %arg2[%c34] : memref<36xf32, #tpu.memory_space<smem>>
    %c3_127 = arith.constant 3 : index
    %c2_128 = arith.constant 2 : index
    %c1_129 = arith.constant 1 : index
    %227 = vector.load %arg7[%c3_127, %c2_128, %c1_129] : memref<4x10x18xf32, #tpu.memory_space<vmem>>, vector<1x8x16xf32>
    %228 = vector.shape_cast %227 : vector<1x8x16xf32> to vector<8x16xf32>
    %229 = vector.broadcast %226 : f32 to vector<8x16xf32>
    %230 = arith.mulf %228, %229 : vector<8x16xf32>
    %231 = arith.addf %225, %230 : vector<8x16xf32>
    %c35 = arith.constant 35 : index
    %232 = memref.load %arg2[%c35] : memref<36xf32, #tpu.memory_space<smem>>
    %c3_130 = arith.constant 3 : index
    %c2_131 = arith.constant 2 : index
    %c2_132 = arith.constant 2 : index
    %233 = vector.load %arg7[%c3_130, %c2_131, %c2_132] : memref<4x10x18xf32, #tpu.memory_space<vmem>>, vector<1x8x16xf32>
    %234 = vector.shape_cast %233 : vector<1x8x16xf32> to vector<8x16xf32>
    %235 = vector.broadcast %232 : f32 to vector<8x16xf32>
    %236 = arith.mulf %234, %235 : vector<8x16xf32>
    %237 = arith.addf %231, %236 : vector<8x16xf32>
    %238 = arith.negf %237 : vector<8x16xf32>
    %239 = math.exp %238 : vector<8x16xf32>
    %cst_133 = arith.constant 1.000000e+00 : f32
    %240 = vector.broadcast %cst_133 : f32 to vector<8x16xf32>
    %241 = arith.addf %240, %239 : vector<8x16xf32>
    %242 = arith.divf %240, %241 : vector<8x16xf32>
    %c0_134 = arith.constant 0 : index
    %c0_135 = arith.constant 0 : index
    %c0_136 = arith.constant 0 : index
    %243 = vector.load %arg6[%c0_134, %c0_135, %c0_136] : memref<1x8x16xf32, #tpu.memory_space<vmem>>, vector<1x8x16xf32>
    %244 = vector.shape_cast %243 : vector<1x8x16xf32> to vector<8x16xf32>
    %245 = vector.shape_cast %242 : vector<8x16xf32> to vector<1x8x16xf32>
    tpu.vector_store %arg6[%c0_134, %c0_135, %c0_136], %245 {strides = array<i32>} : memref<1x8x16xf32, #tpu.memory_space<vmem>>, vector<1x8x16xf32>,
    return
  }
  func.func @transform_0(%arg0: i32, %arg1: i32) -> i32 {
    %c0_i32 = arith.constant 0 : i32
    %c0_i32_0 = arith.constant 0 : i32
    return %c0_i32 : i32
  }
  func.func @transform_1(%arg0: i32, %arg1: i32) -> (i32, i32, i32, i32) {
    %c0_i32 = arith.constant 0 : i32
    %c0_i32_0 = arith.constant 0 : i32
    %c0_i32_1 = arith.constant 0 : i32
    return %arg0, %c0_i32, %arg1, %c0_i32_0 : i32, i32, i32, i32
  }
  func.func @transform_2(%arg0: i32, %arg1: i32) -> (i32, i32, i32, i32) {
    %c1_i32 = arith.constant 1 : i32
    %0 = arith.muli %arg1, %c1_i32 : i32
    %c1_i32_0 = arith.constant 1 : i32
    %1 = arith.subi %0, %c1_i32_0 : i32
    %c0_i32 = arith.constant 0 : i32
    %2 = arith.maxsi %1, %c0_i32 : i32
    %c0_i32_1 = arith.constant 0 : i32
    %c0_i32_2 = arith.constant 0 : i32
    %c0_i32_3 = arith.constant 0 : i32
    return %arg0, %c0_i32_1, %2, %c0_i32_2 : i32, i32, i32, i32
  }
  func.func @transform_3(%arg0: i32, %arg1: i32) -> (i32, i32, i32, i32) {
    %c1_i32 = arith.constant 1 : i32
    %0 = arith.addi %arg1, %c1_i32 : i32
    %c1_i32_0 = arith.constant 1 : i32
    %1 = arith.muli %0, %c1_i32_0 : i32
    %c1_i32_1 = arith.constant 1 : i32
    %2 = arith.minsi %1, %c1_i32_1 : i32
    %c0_i32 = arith.constant 0 : i32
    %c0_i32_2 = arith.constant 0 : i32
    %c0_i32_3 = arith.constant 0 : i32
    return %arg0, %c0_i32, %2, %c0_i32_2 : i32, i32, i32, i32
  }
  func.func @transform_4(%arg0: i32, %arg1: i32) -> (i32, i32, i32) {
    %c0_i32 = arith.constant 0 : i32
    %c0_i32_0 = arith.constant 0 : i32
    return %arg0, %arg1, %c0_i32 : i32, i32, i32
  }
}

</mosaic_0001>

<llo_original>
// kernel: tpu_custom_call.1
$region0: #{tpu_custom_call.1}
  #allocation0 [shape = 'u32[]', space=smem, size = 0x4, offset = 0x4, fixed_abs, tag = 'smem constant byte address 0x4 - core index']
  #allocation1 [shape = 'u32[144,128]{1,0:T(1,128)}', space=vmem, size = 0x12000, scoped, tag = 'internal scratch']
  #allocation2 [shape = 'f32[4,10,18]{2,1,0:T(8,128)}', space=vmem, size = 0x8000, scoped, tag = 'scratch operand']
  %s0 = inlined_call_operand.hbm [shape: f32[36], index: 0, kind: input, shape index: {}]
  %s1 = inlined_call_operand.hbm [shape: f32[2,4,16,16], index: 1, kind: input, shape index: {}]
  %s2 = inlined_call_operand.hbm [shape: f32[2,4,16,16], index: 2, kind: input, shape index: {}]
  %s3 = inlined_call_operand.hbm [shape: f32[2,4,16,16], index: 3, kind: input, shape index: {}]
  %s4 = inlined_call_operand.hbm [shape: f32[2,16,16], index: 4, kind: output, shape index: {}]
  %s5 = sld [smem:[#allocation0]]
  $region65: #{tpu_custom_call.1} parent=0
    _
  %s7 = ssub.s32 1, %s5
  %s8 = scalar_select 0, %s7, %s5
  $region1: #{tpu_custom_call.1} parent=0
    #allocation3 [shape = 'u8[512]{0}', space=smem, size = 0x200, scoped, tag = 'input window, operand 0, single buffered']
    #allocation4 [shape = 's32[2]{0}', space=sflag, size = 0x8, scoped, tag = 'scoped memory for tpu_custom_call.1']
    #allocation5 [shape = 's32[2]{0}', space=sflag, size = 0x8, scoped, tag = 'scoped memory for tpu_custom_call.1']
    #allocation6 [shape = 's32[2]{0}', space=sflag, size = 0x8, scoped, tag = 'scoped memory for tpu_custom_call.1']
    #allocation7 [shape = 'u8[32768]{0}', space=vmem, size = 0x8000, scoped, tag = 'input window, operand 1']
    #allocation8 [shape = 'u8[32768]{0}', space=vmem, size = 0x8000, scoped, tag = 'input window, operand 2']
    #allocation9 [shape = 's32[2]{0}', space=sflag, size = 0x8, scoped, tag = 'scoped memory for tpu_custom_call.1']
    #allocation10 [shape = 'u8[32768]{0}', space=vmem, size = 0x8000, scoped, tag = 'input window, operand 3']
    #allocation11 [shape = 'u8[8192]{0}', space=vmem, size = 0x2000, scoped, tag = 'output window, operand 0']
    %9 = vsyncpa [#allocation6], 0
    %10 = vsyncpa [#allocation4], 0
    %s11 = scalar_lea.sflag [#allocation4], 1
    %12 = vsyncpa %s11, 0
    %13 = vsyncpa [#allocation9], 0
    %s14 = scalar_lea.sflag [#allocation9], 1
    %15 = vsyncpa %s14, 0
    %16 = vsyncpa [#allocation5], 0
    %s17 = scalar_lea.sflag [#allocation5], 1
    %18 = vsyncpa %s17, 0
    loop: start=0, step=1, limit=6
    $region2: #{tpu_custom_call.1} parent=1 // loop_pre_header
      _
    $region3: #{tpu_custom_call.1} parent=1 // loop_header
      %s20 = sphi 0, %s24
      %p21 = scmp.ge.s32.totalorder %s20, 6
      %s27 = sphi 0, %s39
      %s28 = sphi 0, %s35
      %s29 = sphi 0, %s27
      %s30 = sphi 0, %s28
      %s31 = sphi 0, %s29
      %s32 = sphi 0, %s30
      %s40 = sphi 0, %s40
      %s42 = sphi 0, %s40
      %s43 = sphi 0, %s42
      %s57 = sphi 0, %s43
      %s65 = sphi 0, %s67
      %s68 = sphi 0, %s65
      %s69 = sphi 0, %s68
      %s85 = sphi 0, %s69
      %s99 = sphi 0, %s101
      %s102 = sphi 0, %s99
      %s103 = sphi 0, %s102
      %s119 = sphi 0, %s103
      %s133 = sphi 0, %s135
      %s136 = sphi 0, %s133
      %s137 = sphi 0, %s136
      %s153 = sphi 0, %s137
      %s161 = sphi 0, %s163
      %s164 = sphi 0, %s161
      %s165 = sphi 0, %s164
      %s181 = sphi 0, %s165
    $region4: #{tpu_custom_call.1} parent=1 // loop_header_branch
      %23 = sbr.rel (%p21) target = $region8
    $region5: #{tpu_custom_call.1} parent=1 // loop_body
      %s25 = ssub.s32 %s20, 1
      %s26 = ssub.s32 %s20, 2
      %s33 = sadd.s32 1, %s28
      %p34 = scmp.ge.s32.totalorder %s33, 2
      %s35 = scalar_select %p34, 0, %s33
      %s36 = sadd.s32 1, %s27
      %s37 = scalar_select %p34, %s36, %s27
      %p38 = scmp.ge.s32.totalorder %s37, 2
      %s39 = scalar_select %p38, 0, %s37
      %s41 = sadd.s32 %s40, 1
      %p44 = scmp.eq.s32.totalorder %s20, 3
      %p45 = scmp.ne.s32.totalorder %s40, %s42
      %p46 = scmp.eq.s32.totalorder %s20, 0
      %p47 = por %p45, %p46
      %p48 = scmp.ne.s32.totalorder %s40, %s42
      %p49 = scmp.eq.s32.totalorder %s25, 3
      %p50 = por %p48, %p49
      %p51 = scmp.ne.s32.totalorder %s42, %s43
      %p52 = scmp.eq.s32.totalorder %s25, 0
      %p53 = por %p51, %p52
      %p54 = scmp.ne.s32.totalorder %s42, %s43
      %p55 = scmp.eq.s32.totalorder %s26, 3
      %p56 = por %p54, %p55
      %p58 = scmp.ne.s32.totalorder %s43, %s57
      %p59 = scmp.eq.s32.totalorder %s26, 0
      %p60 = por %p58, %p59
      %s61 = ssub.s32 %s27, %s39
      %s62 = ssub.s32 %s28, %s35
      %s63 = sor.u32 %s61, %s62
      %p64 = scmp.eq.s32.totalorder %s63, 0
      %s66 = sadd.s32 %s65, 1
      %s67 = scalar_select %p64, %s65, %s66
      %p70 = pneg %p64
      %p71 = scmp.eq.s32.totalorder %s20, 3
      %p72 = por %p70, %p71
      %p73 = scmp.ne.s32.totalorder %s65, %s68
      %p74 = scmp.eq.s32.totalorder %s20, 0
      %p75 = por %p73, %p74
      %p76 = scmp.ne.s32.totalorder %s65, %s68
      %p77 = scmp.eq.s32.totalorder %s25, 3
      %p78 = por %p76, %p77
      %p79 = scmp.ne.s32.totalorder %s68, %s69
      %p80 = scmp.eq.s32.totalorder %s25, 0
      %p81 = por %p79, %p80
      %p82 = scmp.ne.s32.totalorder %s68, %s69
      %p83 = scmp.eq.s32.totalorder %s26, 3
      %p84 = por %p82, %p83
      %p86 = scmp.ne.s32.totalorder %s69, %s85
      %p87 = scmp.eq.s32.totalorder %s26, 0
      %p88 = por %p86, %p87
      %s89 = ssub.s32 %s28, 1
      %p90 = scmp.gt.s32.totalorder %s89, 0
      %s91 = scalar_select %p90, %s89, 0
      %s92 = ssub.s32 %s35, 1
      %p93 = scmp.gt.s32.totalorder %s92, 0
      %s94 = scalar_select %p93, %s92, 0
      %s95 = ssub.s32 %s27, %s39
      %s96 = ssub.s32 %s91, %s94
      %s97 = sor.u32 %s95, %s96
      %p98 = scmp.eq.s32.totalorder %s97, 0
      %s100 = sadd.s32 %s99, 1
      %s101 = scalar_select %p98, %s99, %s100
      %p104 = pneg %p98
      %p105 = scmp.eq.s32.totalorder %s20, 3
      %p106 = por %p104, %p105
      %p107 = scmp.ne.s32.totalorder %s99, %s102
      %p108 = scmp.eq.s32.totalorder %s20, 0
      %p109 = por %p107, %p108
      %p110 = scmp.ne.s32.totalorder %s99, %s102
      %p111 = scmp.eq.s32.totalorder %s25, 3
      %p112 = por %p110, %p111
      %p113 = scmp.ne.s32.totalorder %s102, %s103
      %p114 = scmp.eq.s32.totalorder %s25, 0
      %p115 = por %p113, %p114
      %p116 = scmp.ne.s32.totalorder %s102, %s103
      %p117 = scmp.eq.s32.totalorder %s26, 3
      %p118 = por %p116, %p117
      %p120 = scmp.ne.s32.totalorder %s103, %s119
      %p121 = scmp.eq.s32.totalorder %s26, 0
      %p122 = por %p120, %p121
      %s123 = sadd.s32 %s28, 1
      %p124 = scmp.lt.s32.totalorder %s123, 1
      %s125 = scalar_select %p124, %s123, 1
      %s126 = sadd.s32 %s35, 1
      %p127 = scmp.lt.s32.totalorder %s126, 1
      %s128 = scalar_select %p127, %s126, 1
      %s129 = ssub.s32 %s27, %s39
      %s130 = ssub.s32 %s125, %s128
      %s131 = sor.u32 %s129, %s130
      %p132 = scmp.eq.s32.totalorder %s131, 0
      %s134 = sadd.s32 %s133, 1
      %s135 = scalar_select %p132, %s133, %s134
      %p138 = pneg %p132
      %p139 = scmp.eq.s32.totalorder %s20, 3
      %p140 = por %p138, %p139
      %p141 = scmp.ne.s32.totalorder %s133, %s136
      %p142 = scmp.eq.s32.totalorder %s20, 0
      %p143 = por %p141, %p142
      %p144 = scmp.ne.s32.totalorder %s133, %s136
      %p145 = scmp.eq.s32.totalorder %s25, 3
      %p146 = por %p144, %p145
      %p147 = scmp.ne.s32.totalorder %s136, %s137
      %p148 = scmp.eq.s32.totalorder %s25, 0
      %p149 = por %p147, %p148
      %p150 = scmp.ne.s32.totalorder %s136, %s137
      %p151 = scmp.eq.s32.totalorder %s26, 3
      %p152 = por %p150, %p151
      %p154 = scmp.ne.s32.totalorder %s137, %s153
      %p155 = scmp.eq.s32.totalorder %s26, 0
      %p156 = por %p154, %p155
      %s157 = ssub.s32 %s27, %s39
      %s158 = ssub.s32 %s28, %s35
      %s159 = sor.u32 %s157, %s158
      %p160 = scmp.eq.s32.totalorder %s159, 0
      %s162 = sadd.s32 %s161, 1
      %s163 = scalar_select %p160, %s161, %s162
      %p166 = pneg %p160
      %p167 = scmp.eq.s32.totalorder %s20, 3
      %p168 = por %p166, %p167
      %p169 = scmp.ne.s32.totalorder %s161, %s164
      %p170 = scmp.eq.s32.totalorder %s20, 0
      %p171 = por %p169, %p170
      %p172 = scmp.ne.s32.totalorder %s161, %s164
      %p173 = scmp.eq.s32.totalorder %s25, 3
      %p174 = por %p172, %p173
      %p175 = scmp.ne.s32.totalorder %s164, %s165
      %p176 = scmp.eq.s32.totalorder %s25, 0
      %p177 = por %p175, %p176
      %p178 = scmp.ne.s32.totalorder %s164, %s165
      %p179 = scmp.eq.s32.totalorder %s26, 3
      %p180 = por %p178, %p179
      %p182 = scmp.ne.s32.totalorder %s165, %s181
      %p183 = scmp.eq.s32.totalorder %s26, 0
      %p184 = por %p182, %p183
      %p185 = scmp.le.s32.totalorder 1, %s20
      %p186 = scmp.lt.s32.totalorder %s20, 5
      %p187 = pnand %p185, %p186
      %p188 = pneg %p187
      // Predicated region
      $region9: #{tpu_custom_call.1} parent=5 // pred_check
        _
      $region10: #{tpu_custom_call.1} parent=5 // pred_check_branch
        %190 = sbr.rel (%p187) target = $region12
      $region11: #{tpu_custom_call.1} parent=5 // pred_region
        %s191 = ssub.s32 %s20, 1
        // Predicated region
        $region13: #{tpu_custom_call.1} parent=11 // pred_check
          %p192 = pneg %p53
        $region14: #{tpu_custom_call.1} parent=11 // pred_check_branch
          %194 = sbr.rel (%p192) target = $region16
        $region15: #{tpu_custom_call.1} parent=11 // pred_region
          %s196 = ssub.s32 16, 16
          %197 = vsyncadd [#allocation6], %s196
          %200 = dma.hbm_to_smem %s0, 16, [#allocation3], [#allocation6]
        $region16: #{tpu_custom_call.1} parent=11 // pred_fallthru
          _
      $region12: #{tpu_custom_call.1} parent=5 // pred_fallthru
        _
      %p201 = scmp.lt.s32.totalorder %s20, 4
      // Predicated region
      $region17: #{tpu_custom_call.1} parent=5 // pred_check
        %p202 = pneg %p201
      $region18: #{tpu_custom_call.1} parent=5 // pred_check_branch
        %204 = sbr.rel (%p202) target = $region20
      $region19: #{tpu_custom_call.1} parent=5 // pred_region
        // Predicated region
        $region21: #{tpu_custom_call.1} parent=19 // pred_check
          %p205 = pneg %p75
        $region22: #{tpu_custom_call.1} parent=19 // pred_check_branch
          %207 = sbr.rel (%p205) target = $region24
        $region23: #{tpu_custom_call.1} parent=19 // pred_region
          %s208 = sand.u32 %s65, 1
          %s209 = scalar_lea.sflag [#allocation4], %s208
          %s210 = sand.u32 %s65, 1
          %s211 = smul.addr %s210, 32
          %s212 = scalar_lea.vmem [#allocation7], %s211
          %s214 = ssub.s32 512, 512
          %215 = vsyncadd %s209, %s214
          %s216 = smul.addr %s27, 8
          %s217 = sadd.s32 %s28, %s216
          %s218 = smul.addr %s217, 128
          %s219 = scalar_lea.hbm %s1, %s218
          %s220 = sshll.u32 %s212, 4
          %s221 = int_to_ptr.vmem [resolvable:$true] %s220
          %226 = dma.hbm_to_vmem [thread:$0]  %s219, 512, %s221, %s209, 256, 128, 8
        $region24: #{tpu_custom_call.1} parent=19 // pred_fallthru
          _
        // Predicated region
        $region25: #{tpu_custom_call.1} parent=19 // pred_check
          %p227 = pneg %p109
        $region26: #{tpu_custom_call.1} parent=19 // pred_check_branch
          %229 = sbr.rel (%p227) target = $region28
        $region27: #{tpu_custom_call.1} parent=19 // pred_region
          %s230 = sand.u32 %s20, 1
          %s231 = scalar_lea.sflag [#allocation9], %s230
          %s232 = sand.u32 %s99, 1
          %s233 = smul.addr %s232, 32
          %s234 = scalar_lea.vmem [#allocation8], %s233
          %s235 = ssub.s32 %s28, 1
          %p236 = scmp.gt.s32.totalorder %s235, 0
          %s237 = scalar_select %p236, %s235, 0
          %s239 = ssub.s32 512, 512
          %240 = vsyncadd %s231, %s239
          %s241 = smul.addr %s27, 8
          %s242 = sadd.s32 %s237, %s241
          %s243 = smul.addr %s242, 128
          %s244 = scalar_lea.hbm %s2, %s243
          %s245 = sshll.u32 %s234, 4
          %s246 = int_to_ptr.vmem [resolvable:$true] %s245
          %251 = dma.hbm_to_vmem [thread:$0]  %s244, 512, %s246, %s231, 256, 128, 8
        $region28: #{tpu_custom_call.1} parent=19 // pred_fallthru
          _
        // Predicated region
        $region29: #{tpu_custom_call.1} parent=19 // pred_check
          %p252 = pneg %p143
        $region30: #{tpu_custom_call.1} parent=19 // pred_check_branch
          %254 = sbr.rel (%p252) target = $region32
        $region31: #{tpu_custom_call.1} parent=19 // pred_region
          %s255 = sand.u32 %s20, 1
          %s256 = scalar_lea.sflag [#allocation9], %s255
          %s257 = sand.u32 %s133, 1
          %s258 = smul.addr %s257, 32
          %s259 = scalar_lea.vmem [#allocation10], %s258
          %s260 = sadd.s32 %s28, 1
          %p261 = scmp.lt.s32.totalorder %s260, 1
          %s262 = scalar_select %p261, %s260, 1
          %s264 = ssub.s32 512, 512
          %265 = vsyncadd %s256, %s264
          %s266 = smul.addr %s27, 8
          %s267 = sadd.s32 %s262, %s266
          %s268 = smul.addr %s267, 128
          %s269 = scalar_lea.hbm %s3, %s268
          %s270 = sshll.u32 %s259, 4
          %s271 = int_to_ptr.vmem [resolvable:$true] %s270
          %276 = dma.hbm_to_vmem [thread:$0]  %s269, 512, %s271, %s256, 256, 128, 8
        $region32: #{tpu_custom_call.1} parent=19 // pred_fallthru
          _
      $region20: #{tpu_custom_call.1} parent=5 // pred_fallthru
        _
      %p277 = scmp.le.s32.totalorder 1, %s20
      %p278 = scmp.lt.s32.totalorder %s20, 5
      %p279 = pnand %p277, %p278
      %p280 = pneg %p279
      // Predicated region
      $region33: #{tpu_custom_call.1} parent=5 // pred_check
        _
      $region34: #{tpu_custom_call.1} parent=5 // pred_check_branch
        %282 = sbr.rel (%p279) target = $region36
      $region35: #{tpu_custom_call.1} parent=5 // pred_region
        %s283 = ssub.s32 %s20, 1
        // Predicated region
        $region37: #{tpu_custom_call.1} parent=35 // pred_check
          %p284 = pneg %p53
        $region38: #{tpu_custom_call.1} parent=35 // pred_check_branch
          %286 = sbr.rel (%p284) target = $region40
        $region39: #{tpu_custom_call.1} parent=35 // pred_region
          %287 = dma.done [#allocation6], 16
        $region40: #{tpu_custom_call.1} parent=35 // pred_fallthru
          _
        %s288 = sand.u32 %s68, 1
        %s289 = scalar_lea.sflag [#allocation4], %s288
        %s290 = sand.u32 %s68, 1
        %s291 = smul.addr %s290, 32
        %s292 = scalar_lea.vmem [#allocation7], %s291
        // Predicated region
        $region41: #{tpu_custom_call.1} parent=35 // pred_check
          %p293 = pneg %p81
        $region42: #{tpu_custom_call.1} parent=35 // pred_check_branch
          %295 = sbr.rel (%p293) target = $region44
        $region43: #{tpu_custom_call.1} parent=35 // pred_region
          %296 = dma.done %s289, 512
        $region44: #{tpu_custom_call.1} parent=35 // pred_fallthru
          _
        %s297 = sand.u32 %s25, 1
        %s298 = scalar_lea.sflag [#allocation9], %s297
        %s299 = sand.u32 %s102, 1
        %s300 = smul.addr %s299, 32
        %s301 = scalar_lea.vmem [#allocation8], %s300
        // Predicated region
        $region45: #{tpu_custom_call.1} parent=35 // pred_check
          %p302 = pneg %p115
        $region46: #{tpu_custom_call.1} parent=35 // pred_check_branch
          %304 = sbr.rel (%p302) target = $region48
        $region47: #{tpu_custom_call.1} parent=35 // pred_region
          %305 = dma.done %s298, 512
        $region48: #{tpu_custom_call.1} parent=35 // pred_fallthru
          _
        %s306 = sand.u32 %s25, 1
        %s307 = scalar_lea.sflag [#allocation9], %s306
        %s308 = sand.u32 %s136, 1
        %s309 = smul.addr %s308, 32
        %s310 = scalar_lea.vmem [#allocation10], %s309
        // Predicated region
        $region49: #{tpu_custom_call.1} parent=35 // pred_check
          %p311 = pneg %p149
        $region50: #{tpu_custom_call.1} parent=35 // pred_check_branch
          %313 = sbr.rel (%p311) target = $region52
        $region51: #{tpu_custom_call.1} parent=35 // pred_region
          %314 = dma.done %s307, 512
        $region52: #{tpu_custom_call.1} parent=35 // pred_fallthru
          _
        %315 = sfence
        %p316 = pneg %p53
        %p317 = pneg %p50
        %s318 = sand.u32 %s68, 1
        %s319 = scalar_lea.sflag [#allocation4], %s318
        %s320 = sand.u32 %s68, 1
        %s321 = smul.addr %s320, 32
        %s322 = scalar_lea.vmem [#allocation7], %s321
        %p323 = pneg %p81
        %p324 = pneg %p78
        %s325 = sand.u32 %s25, 1
        %s326 = scalar_lea.sflag [#allocation9], %s325
        %s327 = sand.u32 %s102, 1
        %s328 = smul.addr %s327, 32
        %s329 = scalar_lea.vmem [#allocation8], %s328
        %p330 = pneg %p115
        %p331 = pneg %p112
        %s332 = sand.u32 %s25, 1
        %s333 = scalar_lea.sflag [#allocation9], %s332
        %s334 = sand.u32 %s136, 1
        %s335 = smul.addr %s334, 32
        %s336 = scalar_lea.vmem [#allocation10], %s335
        %p337 = pneg %p149
        %p338 = pneg %p146
        %p339 = pneg %p177
        %p340 = pneg %p174
        %s341 = sand.u32 %s164, 1
        %s342 = scalar_lea.sflag [#allocation5], %s341
        %s343 = sand.u32 %s164, 1
        %s344 = smul.addr %s343, 8
        %s345 = scalar_lea.vmem [#allocation11], %s344
        %s346 = ssub.s32 %s30, 1
        %p347 = scmp.gt.s32.totalorder %s346, 0
        %s348 = scalar_select %p347, %s346, 0
        %s349 = sadd.s32 %s30, 1
        %p350 = scmp.lt.s32.totalorder %s349, 1
        %s351 = scalar_select %p350, %s349, 1
        %vm352 = vcmask 146432
        %353 = vst.msk [vmem:[#allocation2] sm:$0xff] %vm352, 0.0
        %vm354 = vcmask 140288
        %355 = vst.msk [vmem:[#allocation2 + $0x8] sm:$0x3] %vm354, 0.0
        %356 = vst.msk [vmem:[#allocation2 + $0x10] sm:$0xff] %vm352, 0.0
        %357 = vst.msk [vmem:[#allocation2 + $0x18] sm:$0x3] %vm354, 0.0
        %358 = vst.msk [vmem:[#allocation2 + $0x20] sm:$0xff] %vm352, 0.0
        %359 = vst.msk [vmem:[#allocation2 + $0x28] sm:$0x3] %vm354, 0.0
        %360 = vst.msk [vmem:[#allocation2 + $0x30] sm:$0xff] %vm352, 0.0
        %361 = vst.msk [vmem:[#allocation2 + $0x38] sm:$0x3] %vm354, 0.0
        %v362 = vld [vmem:[%s292] sm:$0xff]
        %v363 = vld [vmem:[%s292 + $0x8] sm:$0xff]
        %v364 = vld [vmem:[%s292 + $0x10] sm:$0xff]
        %v365 = vld [vmem:[%s292 + $0x18] sm:$0xff]
        %370 = vrot.lane.b32.xlu0 %v362, 1
        %v371 = vpop.permute.xlu0 %370
        %372 = vrot.lane.b32.xlu0 %v363, 1
        %v373 = vpop.permute.xlu0 %372
        %374 = vrot.lane.b32.xlu0 %v364, 1
        %v375 = vpop.permute.xlu0 %374
        %376 = vrot.lane.b32.xlu0 %v365, 1
        %v377 = vpop.permute.xlu0 %376
        %vm382 = vcmask 138248
        %383 = vst.msk [vmem:[#allocation2 + $0x1] sm:$0xff] %vm382, %v371
        %384 = vst.msk [vmem:[#allocation2 + $0x11] sm:$0xff] %vm382, %v373
        %385 = vst.msk [vmem:[#allocation2 + $0x21] sm:$0xff] %vm382, %v375
        %386 = vst.msk [vmem:[#allocation2 + $0x31] sm:$0xff] %vm382, %v377
        %p387 = scmp.gt.s32.totalorder %s30, 0
        %s388 = scalar_select %p387, 1, 0
        %s389 = scvt.s32.f32 %s388
        %p390 = scmp.lt.s32.totalorder %s30, 1
        %s391 = scalar_select %p390, 1, 0
        %s392 = scvt.s32.f32 %s391
        %v393 = vld [vmem:[%s301 + $0x7] sm:$0x1]
        %v394 = vld [vmem:[%s301 + $0xf] sm:$0x1]
        %v395 = vld [vmem:[%s301 + $0x17] sm:$0x1]
        %v396 = vld [vmem:[%s301 + $0x1f] sm:$0x1]
        %v397 = vstv %s389
        %v398 = vmul.f32 %v393, %v397
        %v399 = vmul.f32 %v394, %v397
        %v400 = vmul.f32 %v395, %v397
        %v401 = vmul.f32 %v396, %v397
        %v402 = vld [vmem:[%s310] sm:$0x1]
        %v403 = vld [vmem:[%s310 + $0x8] sm:$0x1]
        %v404 = vld [vmem:[%s310 + $0x10] sm:$0x1]
        %v405 = vld [vmem:[%s310 + $0x18] sm:$0x1]
        %v406 = vstv %s392
        %v407 = vmul.f32 %v402, %v406
        %v408 = vmul.f32 %v403, %v406
        %v409 = vmul.f32 %v404, %v406
        %v410 = vmul.f32 %v405, %v406
        %415 = vrot.lane.b32.xlu0 %v398, 1
        %v416 = vpop.permute.xlu0 %415
        %417 = vrot.lane.b32.xlu0 %v399, 1
        %v418 = vpop.permute.xlu0 %417
        %419 = vrot.lane.b32.xlu0 %v400, 1
        %v420 = vpop.permute.xlu0 %419
        %421 = vrot.lane.b32.xlu0 %v401, 1
        %v422 = vpop.permute.xlu0 %421
        %vm427 = vcmask 131080
        %428 = vst.msk [vmem:[#allocation2] sm:$0x1] %vm427, %v416
        %429 = vst.msk [vmem:[#allocation2 + $0x10] sm:$0x1] %vm427, %v418
        %430 = vst.msk [vmem:[#allocation2 + $0x20] sm:$0x1] %vm427, %v420
        %431 = vst.msk [vmem:[#allocation2 + $0x30] sm:$0x1] %vm427, %v422
        %436 = vrot.lane.b32.xlu0 %v407, 1
        %v437 = vpop.permute.xlu0 %436
        %438 = vrot.lane.b32.xlu0 %v408, 1
        %v439 = vpop.permute.xlu0 %438
        %440 = vrot.lane.b32.xlu0 %v409, 1
        %v441 = vpop.permute.xlu0 %440
        %442 = vrot.lane.b32.xlu0 %v410, 1
        %v443 = vpop.permute.xlu0 %442
        %448 = vst.msk [vmem:[#allocation2 + $0x9] sm:$0x1] %vm427, %v437
        %449 = vst.msk [vmem:[#allocation2 + $0x19] sm:$0x1] %vm427, %v439
        %450 = vst.msk [vmem:[#allocation2 + $0x29] sm:$0x1] %vm427, %v441
        %451 = vst.msk [vmem:[#allocation2 + $0x39] sm:$0x1] %vm427, %v443
        %s452 = sld [smem:[#allocation3]]
        %v453 = vld [vmem:[#allocation2] sm:$0xff]
        %v454 = vstv %s452
        %v455 = vmul.f32 %v453, %v454
        %v456 = vadd.f32 %v455, 0.0
        %s457 = sld [smem:[#allocation3 + $0x1]]
        %v458 = vstv %s457
        %v459 = vmul.f32 %v453, %v458
        %461 = vrot.lane.b32.xlu0 %v459, 127
        %v462 = vpop.permute.xlu0 %461
        %v464 = vadd.f32 %v456, %v462
        %s465 = sld [smem:[#allocation3 + $0x2]]
        %v466 = vstv %s465
        %v467 = vmul.f32 %v453, %v466
        %469 = vrot.lane.b32.xlu0 %v467, 126
        %v470 = vpop.permute.xlu0 %469
        %v472 = vadd.f32 %v464, %v470
        %s473 = sld [smem:[#allocation3 + $0x3]]
        %v474 = vld [vmem:[#allocation2 + $0x1] sm:$0xff]
        %v475 = vstv %s473
        %v476 = vmul.f32 %v474, %v475
        %v477 = vadd.f32 %v472, %v476
        %s478 = sld [smem:[#allocation3 + $0x4]]
        %v479 = vstv %s478
        %v480 = vmul.f32 %v474, %v479
        %482 = vrot.lane.b32.xlu0 %v480, 127
        %v483 = vpop.permute.xlu0 %482
        %v485 = vadd.f32 %v477, %v483
        %s486 = sld [smem:[#allocation3 + $0x5]]
        %v487 = vstv %s486
        %v488 = vmul.f32 %v474, %v487
        %490 = vrot.lane.b32.xlu0 %v488, 126
        %v491 = vpop.permute.xlu0 %490
        %v493 = vadd.f32 %v485, %v491
        %s494 = sld [smem:[#allocation3 + $0x6]]
        %v495 = vld [vmem:[#allocation2 + $0x2] sm:$0xff]
        %v496 = vstv %s494
        %v497 = vmul.f32 %v495, %v496
        %v498 = vadd.f32 %v493, %v497
        %s499 = sld [smem:[#allocation3 + $0x7]]
        %v500 = vstv %s499
        %v501 = vmul.f32 %v495, %v500
        %503 = vrot.lane.b32.xlu0 %v501, 127
        %v504 = vpop.permute.xlu0 %503
        %v506 = vadd.f32 %v498, %v504
        %s507 = sld [smem:[#allocation3 + $0x8]]
        %v508 = vstv %s507
        %v509 = vmul.f32 %v495, %v508
        %511 = vrot.lane.b32.xlu0 %v509, 126
        %v512 = vpop.permute.xlu0 %511
        %v514 = vadd.f32 %v506, %v512
        %s515 = sld [smem:[#allocation3 + $0x9]]
        %s516 = scalar_lea.vmem [#allocation2], 16
        %v517 = vld [vmem:[%s516] sm:$0xff]
        %v518 = vstv %s515
        %v519 = vmul.f32 %v517, %v518
        %v520 = vadd.f32 %v514, %v519
        %s521 = sld [smem:[#allocation3 + $0xa]]
        %v522 = vstv %s521
        %v523 = vmul.f32 %v517, %v522
        %525 = vrot.lane.b32.xlu0 %v523, 127
        %v526 = vpop.permute.xlu0 %525
        %v528 = vadd.f32 %v520, %v526
        %s529 = sld [smem:[#allocation3 + $0xb]]
        %v530 = vstv %s529
        %v531 = vmul.f32 %v517, %v530
        %533 = vrot.lane.b32.xlu0 %v531, 126
        %v534 = vpop.permute.xlu0 %533
        %v536 = vadd.f32 %v528, %v534
        %s537 = sld [smem:[#allocation3 + $0xc]]
        %v538 = vld [vmem:[%s516 + $0x1] sm:$0xff]
        %v539 = vstv %s537
        %v540 = vmul.f32 %v538, %v539
        %v541 = vadd.f32 %v536, %v540
        %s542 = sld [smem:[#allocation3 + $0xd]]
        %v543 = vstv %s542
        %v544 = vmul.f32 %v538, %v543
        %546 = vrot.lane.b32.xlu0 %v544, 127
        %v547 = vpop.permute.xlu0 %546
        %v549 = vadd.f32 %v541, %v547
        %s550 = sld [smem:[#allocation3 + $0xe]]
        %v551 = vstv %s550
        %v552 = vmul.f32 %v538, %v551
        %554 = vrot.lane.b32.xlu0 %v552, 126
        %v555 = vpop.permute.xlu0 %554
        %v557 = vadd.f32 %v549, %v555
        %s558 = sld [smem:[#allocation3 + $0xf]]
        %v559 = vld [vmem:[%s516 + $0x2] sm:$0xff]
        %v560 = vstv %s558
        %v561 = vmul.f32 %v559, %v560
        %v562 = vadd.f32 %v557, %v561
        %s563 = sld [smem:[#allocation3 + $0x10]]
        %v564 = vstv %s563
        %v565 = vmul.f32 %v559, %v564
        %567 = vrot.lane.b32.xlu0 %v565, 127
        %v568 = vpop.permute.xlu0 %567
        %v570 = vadd.f32 %v562, %v568
        %s571 = sld [smem:[#allocation3 + $0x11]]
        %v572 = vstv %s571
        %v573 = vmul.f32 %v559, %v572
        %575 = vrot.lane.b32.xlu0 %v573, 126
        %v576 = vpop.permute.xlu0 %575
        %v578 = vadd.f32 %v570, %v576
        %s579 = sld [smem:[#allocation3 + $0x12]]
        %s580 = scalar_lea.vmem [#allocation2], 32
        %v581 = vld [vmem:[%s580] sm:$0xff]
        %v582 = vstv %s579
        %v583 = vmul.f32 %v581, %v582
        %v584 = vadd.f32 %v578, %v583
        %s585 = sld [smem:[#allocation3 + $0x13]]
        %v586 = vstv %s585
        %v587 = vmul.f32 %v581, %v586
        %589 = vrot.lane.b32.xlu0 %v587, 127
        %v590 = vpop.permute.xlu0 %589
        %v592 = vadd.f32 %v584, %v590
        %s593 = sld [smem:[#allocation3 + $0x14]]
        %v594 = vstv %s593
        %v595 = vmul.f32 %v581, %v594
        %597 = vrot.lane.b32.xlu0 %v595, 126
        %v598 = vpop.permute.xlu0 %597
        %v600 = vadd.f32 %v592, %v598
        %s601 = sld [smem:[#allocation3 + $0x15]]
        %v602 = vld [vmem:[%s580 + $0x1] sm:$0xff]
        %v603 = vstv %s601
        %v604 = vmul.f32 %v602, %v603
        %v605 = vadd.f32 %v600, %v604
        %s606 = sld [smem:[#allocation3 + $0x16]]
        %v607 = vstv %s606
        %v608 = vmul.f32 %v602, %v607
        %610 = vrot.lane.b32.xlu0 %v608, 127
        %v611 = vpop.permute.xlu0 %610
        %v613 = vadd.f32 %v605, %v611
        %s614 = sld [smem:[#allocation3 + $0x17]]
        %v615 = vstv %s614
        %v616 = vmul.f32 %v602, %v615
        %618 = vrot.lane.b32.xlu0 %v616, 126
        %v619 = vpop.permute.xlu0 %618
        %v621 = vadd.f32 %v613, %v619
        %s622 = sld [smem:[#allocation3 + $0x18]]
        %v623 = vld [vmem:[%s580 + $0x2] sm:$0xff]
        %v624 = vstv %s622
        %v625 = vmul.f32 %v623, %v624
        %v626 = vadd.f32 %v621, %v625
        %s627 = sld [smem:[#allocation3 + $0x19]]
        %v628 = vstv %s627
        %v629 = vmul.f32 %v623, %v628
        %631 = vrot.lane.b32.xlu0 %v629, 127
        %v632 = vpop.permute.xlu0 %631
        %v634 = vadd.f32 %v626, %v632
        %s635 = sld [smem:[#allocation3 + $0x1a]]
        %v636 = vstv %s635
        %v637 = vmul.f32 %v623, %v636
        %639 = vrot.lane.b32.xlu0 %v637, 126
        %v640 = vpop.permute.xlu0 %639
        %v642 = vadd.f32 %v634, %v640
        %s643 = sld [smem:[#allocation3 + $0x1b]]
        %s644 = scalar_lea.vmem [#allocation2], 48
        %v645 = vld [vmem:[%s644] sm:$0xff]
        %v646 = vstv %s643
        %v647 = vmul.f32 %v645, %v646
        %v648 = vadd.f32 %v642, %v647
        %s649 = sld [smem:[#allocation3 + $0x1c]]
        %v650 = vstv %s649
        %v651 = vmul.f32 %v645, %v650
        %653 = vrot.lane.b32.xlu0 %v651, 127
        %v654 = vpop.permute.xlu0 %653
        %v656 = vadd.f32 %v648, %v654
        %s657 = sld [smem:[#allocation3 + $0x1d]]
        %v658 = vstv %s657
        %v659 = vmul.f32 %v645, %v658
        %661 = vrot.lane.b32.xlu0 %v659, 126
        %v662 = vpop.permute.xlu0 %661
        %v664 = vadd.f32 %v656, %v662
        %s665 = sld [smem:[#allocation3 + $0x1e]]
        %v666 = vld [vmem:[%s644 + $0x1] sm:$0xff]
        %v667 = vstv %s665
        %v668 = vmul.f32 %v666, %v667
        %v669 = vadd.f32 %v664, %v668
        %s670 = sld [smem:[#allocation3 + $0x1f]]
        %v671 = vstv %s670
        %v672 = vmul.f32 %v666, %v671
        %674 = vrot.lane.b32.xlu0 %v672, 127
        %v675 = vpop.permute.xlu0 %674
        %v677 = vadd.f32 %v669, %v675
        %s678 = sld [smem:[#allocation3 + $0x20]]
        %v679 = vstv %s678
        %v680 = vmul.f32 %v666, %v679
        %682 = vrot.lane.b32.xlu0 %v680, 126
        %v683 = vpop.permute.xlu0 %682
        %v685 = vadd.f32 %v677, %v683
        %s686 = sld [smem:[#allocation3 + $0x21]]
        %v687 = vld [vmem:[%s644 + $0x2] sm:$0xff]
        %v688 = vstv %s686
        %v689 = vmul.f32 %v687, %v688
        %v690 = vadd.f32 %v685, %v689
        %s691 = sld [smem:[#allocation3 + $0x22]]
        %v692 = vstv %s691
        %v693 = vmul.f32 %v687, %v692
        %695 = vrot.lane.b32.xlu0 %v693, 127
        %v696 = vpop.permute.xlu0 %695
        %v698 = vadd.f32 %v690, %v696
        %s699 = sld [smem:[#allocation3 + $0x23]]
        %v700 = vstv %s699
        %v701 = vmul.f32 %v687, %v700
        %703 = vrot.lane.b32.xlu0 %v701, 126
        %v704 = vpop.permute.xlu0 %703
        %v706 = vadd.f32 %v698, %v704
        %v707 = vxor.u32 %v706, 2147483648
        %v708 = vmul.f32 %v707, 1.442695
        %v709 = vpow.pop %v708
        %v710 = vadd.f32 %v709, 1.0
        %v711 = vrcp.pop %v710
        %v712 = vmul.f32 1.0, %v711
        %vm713 = vcmask 130048
        %714 = vst.msk [vmem:[%s345] sm:$0xff] %vm713, %v712
        %s715 = sand.u32 %s164, 1
        %s716 = scalar_lea.sflag [#allocation5], %s715
        %s717 = sand.u32 %s164, 1
        %s718 = smul.addr %s717, 8
        %s719 = scalar_lea.vmem [#allocation11], %s718
        // Predicated region
        $region53: #{tpu_custom_call.1} parent=35 // pred_check
          %p720 = pneg %p174
        $region54: #{tpu_custom_call.1} parent=35 // pred_check_branch
          %722 = sbr.rel (%p720) target = $region56
        $region55: #{tpu_custom_call.1} parent=35 // pred_region
          %s724 = ssub.s32 128, 128
          %725 = vsyncadd %s716, %s724
          %s726 = smul.addr %s29, 2
          %s727 = sadd.s32 %s30, %s726
          %s728 = smul.addr %s727, 128
          %s729 = scalar_lea.hbm %s4, %s728
          %s731 = sshll.u32 %s719, 4
          %s732 = int_to_ptr.vmem [resolvable:$true] %s731
          %734 = dma.vmem_to_hbm [thread:$0]  %s732, 128, %s729, %s716
        $region56: #{tpu_custom_call.1} parent=35 // pred_fallthru
          _
      $region36: #{tpu_custom_call.1} parent=5 // pred_fallthru
        _
      %p735 = scmp.le.s32.totalorder 2, %s20
      // Predicated region
      $region57: #{tpu_custom_call.1} parent=5 // pred_check
        %p736 = pneg %p735
      $region58: #{tpu_custom_call.1} parent=5 // pred_check_branch
        %738 = sbr.rel (%p736) target = $region60
      $region59: #{tpu_custom_call.1} parent=5 // pred_region
        %s739 = ssub.s32 %s20, 2
        // Predicated region
        $region61: #{tpu_custom_call.1} parent=59 // pred_check
          %p740 = pneg %p180
        $region62: #{tpu_custom_call.1} parent=59 // pred_check_branch
          %742 = sbr.rel (%p740) target = $region64
        $region63: #{tpu_custom_call.1} parent=59 // pred_region
          %s743 = sand.u32 %s165, 1
          %s744 = scalar_lea.sflag [#allocation5], %s743
          %s745 = sand.u32 %s165, 1
          %s746 = smul.addr %s745, 8
          %s747 = scalar_lea.vmem [#allocation11], %s746
          %748 = dma.done %s744, 128
        $region64: #{tpu_custom_call.1} parent=59 // pred_fallthru
          _
      $region60: #{tpu_custom_call.1} parent=5 // pred_fallthru
        _
    $region6: #{tpu_custom_call.1} parent=1 // loop_footer
      %s24 = sadd.s32 1, %s20
    $region7: #{tpu_custom_call.1} parent=1 // loop_footer_branch
      %19 = sbr.rel target = $region3
    $region8: #{tpu_custom_call.1} parent=1 // loop_exit
      _
    %749 = vsyncpa [#allocation4], 1
    %s750 = scalar_lea.sflag [#allocation4], 1
    %751 = vsyncpa %s750, 1
    %752 = vsyncpa [#allocation9], 1
    %s753 = scalar_lea.sflag [#allocation9], 1
    %754 = vsyncpa %s753, 1
    %755 = vsyncpa [#allocation5], 1
    %s756 = scalar_lea.sflag [#allocation5], 1
    %757 = vsyncpa %s756, 1
    %758 = vsyncpa [#allocation6], 1
    %s759 = scalar_lea.sflag [#allocation6], 1
    %760 = vsyncpa %s759, 1

</llo_original>
